<compile_context>
chip_gen: v5e
topology: v5e:2x2
jax: 0.10.0
libtpu: 0.0.40
codegen_flags: <defaults>
</compile_context>

<pallas_src>
import functools

import jax
import jax.numpy as jnp
from jax.experimental import pallas as pl
from jax.experimental.pallas import tpu as pltpu


_SMALL_ELEMS = 256 * 1024   # below this, plain JAX (launch overhead dominates)


def _residual_kernel(alpha_ref, x_last_ref, x_prev_ref, o_ref):
    """o = (1 - alpha) * x_last + alpha * x_prev   (f32 accumulate on the VPU)."""
    alpha = alpha_ref[0]                       # f32 scalar read from SMEM
    a = x_last_ref[...].astype(jnp.float32)
    b = x_prev_ref[...].astype(jnp.float32)
    o_ref[...] = ((1.0 - alpha) * a + alpha * b).astype(o_ref.dtype)


@functools.lru_cache(maxsize=None)
def _block_bytes_and_vmem_limit():
    """Generation-aware per-operand block size and scoped-VMEM limit."""
    try:
        vmem_cap = pltpu.get_tpu_info().vmem_capacity_bytes
    except Exception:
        vmem_cap = None
    if vmem_cap is not None and vmem_cap <= (64 << 20):
        # v7x-class (64 MiB VMEM/TC, ~3.2 TB/s HBM): bigger blocks amortize the
        # fixed per-step cost.  3 operands x 2 buffers x 8 MiB = 48 MiB < 56 MiB.
        return 8 << 20, 56 << 20
    # v5e / v6e-class (128 MiB VMEM): 4 MiB/operand -> 24 MiB scoped usage; the
    # explicit 32 MiB limit also lifts v5e's 16 MiB default scoped limit.
    return 4 << 20, 32 << 20


def _weighted_sum_jax(a, b, alpha):
    """Fused XLA fallback (tiny tensors, ragged flat sizes, non-float dtypes)."""
    out_dtype = jnp.result_type(a.dtype, b.dtype)
    if not jnp.issubdtype(out_dtype, jnp.floating):
        out_dtype = jnp.float32  # torch promotes integer inputs with a float alpha
    alpha32 = jnp.asarray(alpha, jnp.float32)
    out = (1.0 - alpha32) * a.astype(jnp.float32) + alpha32 * b.astype(jnp.float32)
    return out.astype(out_dtype)


def _weighted_sum_pallas_2d(a2, b2, alpha_arr):
    """a2, b2: (rows, lane) arrays of identical shape/dtype; alpha_arr: (1,) f32."""
    rows, lane = a2.shape
    dtype = a2.dtype
    itemsize = dtype.itemsize
    block_bytes, vmem_limit = _block_bytes_and_vmem_limit()

    # Rows per block: multiple of 32 (covers f32/bf16/int8 sublane packing) when
    # tiled, or the full row count when the whole slab fits in one block.
    block_rows = max(32, (block_bytes // (lane * itemsize)) // 32 * 32)
    block_rows = min(block_rows, rows)
    grid = (pl.cdiv(rows, block_rows),)       # ragged last block handled by Pallas

    data_spec = pl.BlockSpec((block_rows, lane), lambda i: (i, 0))
    return pl.pallas_call(
        _residual_kernel,
        out_shape=jax.ShapeDtypeStruct((rows, lane), dtype),
        grid_spec=pltpu.PrefetchScalarGridSpec(
            num_scalar_prefetch=0,
            grid=grid,
            in_specs=[
                pl.BlockSpec(memory_space=pltpu.MemorySpace.SMEM),  # alpha scalar
                data_spec,                                          # x_last
                data_spec,                                          # x_prev
            ],
            out_specs=data_spec,
        ),
        compiler_params=pltpu.CompilerParams(
            dimension_semantics=("parallel",),
            vmem_limit_bytes=vmem_limit,
        ),
    )(alpha_arr, a2, b2)


def residual_connection(Xs, alpha=0.5, *, min_pallas_elems=_SMALL_ELEMS):
    """Pallas implementation of ResidualConnection.forward."""
    assert len(Xs) >= 1
    x_last = Xs[-1]
    if len(Xs) == 1:
        return x_last

    x_prev = Xs[-2]
    assert x_last.shape == x_prev.shape, "residual inputs must have equal shapes"

    total = x_last.size
    orig_shape = x_last.shape
    same_float = (x_last.dtype == x_prev.dtype
                  and jnp.issubdtype(x_last.dtype, jnp.floating))

    # Largest lane-dense width dividing the flat size (zero-copy reshape).
    lane = next((w for w in (512, 256, 128) if total % w == 0), None)

    # Plain-JAX paths: small/mid tensors (launch + per-step overhead dominate),
    # mixed / non-float dtypes, or truly ragged flat sizes (fused XLA hits the
    # HBM roofline with no extra slice/concat traffic).
    if (not same_float) or (lane is None) or (total < min_pallas_elems):
        return _weighted_sum_jax(x_last, x_prev, alpha)

    alpha_arr = jnp.asarray(alpha, dtype=jnp.float32).reshape(1)
    out2 = _weighted_sum_pallas_2d(
        x_last.reshape(-1, lane), x_prev.reshape(-1, lane), alpha_arr)
    return out2.reshape(orig_shape)


if __name__ == "__main__":
    key = jax.random.PRNGKey(0)
    ks = jax.random.split(key, 8)
    alpha = 0.5

    def ref_fn(Xs, a):
        if len(Xs) == 1:
            return Xs[-1]
        x_last, x_prev = Xs[-1], Xs[-2]
        out = ((1.0 - a) * x_last.astype(jnp.float32)
               + a * x_prev.astype(jnp.float32))
        return out.astype(x_last.dtype)

    # 1) Small NCHW stack (2, 4, 16, 16), len(Xs)=3 -> plain-JAX fast path.
    shape_small = (2, 4, 16, 16)
    xs_small = [jax.random.normal(ks[i], shape_small, jnp.float32) for i in range(3)]
    out = jax.block_until_ready(residual_connection(xs_small, alpha))
    ref = ref_fn(xs_small, alpha)
    assert out.shape == ref.shape and out.dtype == ref.dtype
    assert jnp.allclose(out, ref, atol=1e-6, rtol=1e-6)

    # 2) Lane-aligned input -> Pallas kernel path (forced at small test size).
    shape_big = (2, 8, 64, 64)  # 65536 elements, multiple of 512
    xa = jax.random.normal(ks[3], shape_big, jnp.float32)
    xb = jax.random.normal(ks[4], shape_big, jnp.float32)
    out = jax.block_until_ready(
        residual_connection([xa, xb], alpha, min_pallas_elems=0))
    ref = ref_fn([xa, xb], alpha)
    assert out.shape == ref.shape and out.dtype == ref.dtype
    assert jnp.allclose(out, ref, atol=1e-6, rtol=1e-6)

    # 3) Traced alpha under jit -> no ConcretizationError, no per-alpha recompile.
    fn = jax.jit(lambda a, b, al: residual_connection([a, b], al, min_pallas_elems=0))
    out = jax.block_until_ready(fn(xa, xb, jnp.float32(0.3)))
    ref = ref_fn([xa, xb], 0.3)
    assert jnp.allclose(out, ref, atol=1e-5, rtol=1e-5)

    # 4) Flat size divisible by 128 but not 512 -> lane=128 Pallas path.
    shape_128 = (3, 43, 128)  # 16512 elements = 129 * 128
    ya = jax.random.normal(ks[5], shape_128, jnp.float32)
    yb = jax.random.normal(ks[6], shape_128, jnp.float32)
    out = jax.block_until_ready(
        residual_connection([ya, yb], alpha, min_pallas_elems=0))
    ref = ref_fn([ya, yb], alpha)
    assert jnp.allclose(out, ref, atol=1e-6, rtol=1e-6)

    # 5) Truly ragged flat size -> fused plain-JAX path (no extra traffic).
    shape_ragged = (2, 7, 33, 65)  # 30030 elements, not a multiple of 128
    za = jax.random.normal(ks[7], shape_ragged, jnp.float32)
    zb = jax.random.normal(ks[0], shape_ragged, jnp.float32)
    out = jax.block_until_ready(residual_connection([za, zb], alpha))
    ref = ref_fn([za, zb], alpha)
    assert jnp.allclose(out, ref, atol=1e-6, rtol=1e-6)

    # 6) bf16 inputs through the Pallas path (f32 accumulate, bf16 store).
    ba, bb = xa.astype(jnp.bfloat16), xb.astype(jnp.bfloat16)
    out = jax.block_until_ready(
        residual_connection([ba, bb], alpha, min_pallas_elems=0))
    ref = ref_fn([ba, bb], alpha)
    assert out.dtype == jnp.bfloat16
    assert jnp.allclose(out.astype(jnp.float32), ref.astype(jnp.float32),
                        atol=2e-2, rtol=2e-2)

    # 7) Single-input passthrough (no kernel launch).
    single = residual_connection([xa], alpha)
    assert jnp.array_equal(single, xa)

    print("KERNEL_OK")
</pallas_src>

<mosaic_0001>
module attributes {stable_mosaic.version = 11 : i64} {
  func.func @_residual_kernel(%arg0: i32, %arg1: memref<1xf32, #tpu.memory_space<smem>>, %arg2: memref<128x512xf32, #tpu.memory_space<vmem>>, %arg3: memref<128x512xf32, #tpu.memory_space<vmem>>, %arg4: memref<128x512xf32, #tpu.memory_space<vmem>>) attributes {dimension_semantics = [#tpu.dimension_semantics<parallel>], iteration_bounds = array<i64: 1>, scalar_prefetch = 0 : i64, scratch_operands = 0 : i64, tpu.core_type = #tpu.core_type<tc>, window_params = [{transform_indices = @transform_0, window_bounds = array<i64: 1>}, {transform_indices = @transform_1, window_bounds = array<i64: 128, 512>}, {transform_indices = @transform_2, window_bounds = array<i64: 128, 512>}, {transform_indices = @transform_3, window_bounds = array<i64: 128, 512>}]} {
    %c0 = arith.constant 0 : index
    %0 = memref.load %arg1[%c0] : memref<1xf32, #tpu.memory_space<smem>>
    %c0_0 = arith.constant 0 : index
    %c0_1 = arith.constant 0 : index
    %1 = vector.load %arg2[%c0_0, %c0_1] : memref<128x512xf32, #tpu.memory_space<vmem>>, vector<128x512xf32>
    %c0_2 = arith.constant 0 : index
    %c0_3 = arith.constant 0 : index
    %2 = vector.load %arg3[%c0_2, %c0_3] : memref<128x512xf32, #tpu.memory_space<vmem>>, vector<128x512xf32>
    %cst = arith.constant 1.000000e+00 : f32
    %3 = arith.subf %cst, %0 : f32
    %4 = vector.broadcast %3 : f32 to vector<128x512xf32>
    %5 = arith.mulf %4, %1 : vector<128x512xf32>
    %6 = vector.broadcast %0 : f32 to vector<128x512xf32>
    %7 = arith.mulf %6, %2 : vector<128x512xf32>
    %8 = arith.addf %5, %7 : vector<128x512xf32>
    %c0_4 = arith.constant 0 : index
    %c0_5 = arith.constant 0 : index
    %9 = vector.load %arg4[%c0_4, %c0_5] : memref<128x512xf32, #tpu.memory_space<vmem>>, vector<128x512xf32>
    tpu.vector_store %arg4[%c0_4, %c0_5], %8 {strides = array<i32>} : memref<128x512xf32, #tpu.memory_space<vmem>>, vector<128x512xf32>,
    return
  }
  func.func @transform_0(%arg0: i32) -> i32 {
    %c0_i32 = arith.constant 0 : i32
    %c0_i32_0 = arith.constant 0 : i32
    return %c0_i32 : i32
  }
  func.func @transform_1(%arg0: i32) -> (i32, i32) {
    %c0_i32 = arith.constant 0 : i32
    %c0_i32_0 = arith.constant 0 : i32
    return %arg0, %c0_i32 : i32, i32
  }
  func.func @transform_2(%arg0: i32) -> (i32, i32) {
    %c0_i32 = arith.constant 0 : i32
    %c0_i32_0 = arith.constant 0 : i32
    return %arg0, %c0_i32 : i32, i32
  }
  func.func @transform_3(%arg0: i32) -> (i32, i32) {
    %c0_i32 = arith.constant 0 : i32
    %c0_i32_0 = arith.constant 0 : i32
    return %arg0, %c0_i32 : i32, i32
  }
}

</mosaic_0001>

<llo_original>
// kernel: tpu_custom_call.1
$region0: #{tpu_custom_call.1}
  #allocation0 [shape = 'u32[]', space=smem, size = 0x4, offset = 0x4, fixed_abs, tag = 'smem constant byte address 0x4 - core index']
  #allocation1 [shape = 'u32[72,128]{1,0:T(1,128)}', space=vmem, size = 0x9000, scoped, tag = 'internal scratch']
  #allocation2 [shape = 'f32[1]{0:T(128)S(6)}', space=smem, size = 0x200, scoped, tag = 'scoped memory for tpu_custom_call.1']
  %s0 = inlined_call_operand.<no memory space> [shape: f32[1], index: 0, kind: input, shape index: {}]
  %s1 = inlined_call_operand.hbm [shape: f32[128,512], index: 1, kind: input, shape index: {}]
  %s2 = inlined_call_operand.hbm [shape: f32[128,512], index: 2, kind: input, shape index: {}]
  %s3 = inlined_call_operand.hbm [shape: f32[128,512], index: 3, kind: output, shape index: {}]
  %s4 = sld [smem:[#allocation0]]
  $region30: #{tpu_custom_call.1} parent=0
    _
  %s6 = ssub.s32 1, %s4
  %s7 = scalar_select 0, %s6, %s4
  %8 = sst [smem:[#allocation2]] %s0
  $region1: #{tpu_custom_call.1} parent=0
    #allocation3 [shape = 'u8[262144]{0}', space=vmem, size = 0x40000, scoped, tag = 'input window, operand 1, single buffered']
    #allocation4 [shape = 's32[1]{0}', space=sflag, size = 0x4, scoped, tag = 'scoped memory for tpu_custom_call.1']
    #allocation5 [shape = 's32[1]{0}', space=sflag, size = 0x4, scoped, tag = 'scoped memory for tpu_custom_call.1']
    #allocation6 [shape = 'u8[262144]{0}', space=vmem, size = 0x40000, scoped, tag = 'input window, operand 2, single buffered']
    #allocation7 [shape = 's32[1]{0}', space=sflag, size = 0x4, scoped, tag = 'scoped memory for tpu_custom_call.1']
    #allocation8 [shape = 'u8[262144]{0}', space=vmem, size = 0x40000, scoped, tag = 'output window, operand 0, single buffered']
    %9 = vsyncpa [#allocation4], 0
    %10 = vsyncpa [#allocation7], 0
    %11 = vsyncpa [#allocation5], 0
    // Predicated region
    $region2: #{tpu_custom_call.1} parent=1 // pred_check
      _
    $region3: #{tpu_custom_call.1} parent=1 // pred_check_branch
      %13 = sbr.rel (0) target = $region5
    $region4: #{tpu_custom_call.1} parent=1 // pred_region
      _
    $region5: #{tpu_custom_call.1} parent=1 // pred_fallthru
      _
    // Predicated region
    $region6: #{tpu_custom_call.1} parent=1 // pred_check
      _
    $region7: #{tpu_custom_call.1} parent=1 // pred_check_branch
      %15 = sbr.rel (0) target = $region9
    $region8: #{tpu_custom_call.1} parent=1 // pred_region
      %17 = vsyncadd [#allocation4], 0
      %s18 = sshll.u32 %s1, 4
      %s19 = int_to_ptr.hbm [resolvable:$true] %s18
      %s20 = sshll.u32 [#allocation3], 4
      %s21 = int_to_ptr.vmem [resolvable:$true] %s20
      %26 = dma.hbm_to_vmem [thread:$0]  %s19, 8192, %s21, [#allocation4], 512, 512, 32
    $region9: #{tpu_custom_call.1} parent=1 // pred_fallthru
      _
    // Predicated region
    $region10: #{tpu_custom_call.1} parent=1 // pred_check
      _
    $region11: #{tpu_custom_call.1} parent=1 // pred_check_branch
      %28 = sbr.rel (0) target = $region13
    $region12: #{tpu_custom_call.1} parent=1 // pred_region
      %30 = vsyncadd [#allocation7], 0
      %s31 = sshll.u32 %s2, 4
      %s32 = int_to_ptr.hbm [resolvable:$true] %s31
      %s33 = sshll.u32 [#allocation6], 4
      %s34 = int_to_ptr.vmem [resolvable:$true] %s33
      %39 = dma.hbm_to_vmem [thread:$0]  %s32, 8192, %s34, [#allocation7], 512, 512, 32
    $region13: #{tpu_custom_call.1} parent=1 // pred_fallthru
      _
    // Predicated region
    $region14: #{tpu_custom_call.1} parent=1 // pred_check
      _
    $region15: #{tpu_custom_call.1} parent=1 // pred_check_branch
      %41 = sbr.rel (0) target = $region17
    $region16: #{tpu_custom_call.1} parent=1 // pred_region
      %43 = dma.done [#allocation4], 8192
    $region17: #{tpu_custom_call.1} parent=1 // pred_fallthru
      _
    // Predicated region
    $region18: #{tpu_custom_call.1} parent=1 // pred_check
      _
    $region19: #{tpu_custom_call.1} parent=1 // pred_check_branch
      %45 = sbr.rel (0) target = $region21
    $region20: #{tpu_custom_call.1} parent=1 // pred_region
      %47 = dma.done [#allocation7], 8192
    $region21: #{tpu_custom_call.1} parent=1 // pred_fallthru
      _
    %s48 = sld [smem:[#allocation2]]
    %v49 = vld [vmem:[#allocation3] sm:$0xff]
    %v50 = vld [vmem:[#allocation3 + $0x8] sm:$0xff]
    %v51 = vld [vmem:[#allocation3 + $0x10] sm:$0xff]
    %v52 = vld [vmem:[#allocation3 + $0x18] sm:$0xff]
    %v53 = vld [vmem:[#allocation3 + $0x20] sm:$0xff]
    %v54 = vld [vmem:[#allocation3 + $0x28] sm:$0xff]
    %v55 = vld [vmem:[#allocation3 + $0x30] sm:$0xff]
    %v56 = vld [vmem:[#allocation3 + $0x38] sm:$0xff]
    %v57 = vld [vmem:[#allocation3 + $0x40] sm:$0xff]
    %v58 = vld [vmem:[#allocation3 + $0x48] sm:$0xff]
    %v59 = vld [vmem:[#allocation3 + $0x50] sm:$0xff]
    %v60 = vld [vmem:[#allocation3 + $0x58] sm:$0xff]
    %v61 = vld [vmem:[#allocation3 + $0x60] sm:$0xff]
    %v62 = vld [vmem:[#allocation3 + $0x68] sm:$0xff]
    %v63 = vld [vmem:[#allocation3 + $0x70] sm:$0xff]
    %v64 = vld [vmem:[#allocation3 + $0x78] sm:$0xff]
    %v65 = vld [vmem:[#allocation3 + $0x80] sm:$0xff]
    %v66 = vld [vmem:[#allocation3 + $0x88] sm:$0xff]
    %v67 = vld [vmem:[#allocation3 + $0x90] sm:$0xff]
    %v68 = vld [vmem:[#allocation3 + $0x98] sm:$0xff]
    %v69 = vld [vmem:[#allocation3 + $0xa0] sm:$0xff]
    %v70 = vld [vmem:[#allocation3 + $0xa8] sm:$0xff]
    %v71 = vld [vmem:[#allocation3 + $0xb0] sm:$0xff]
    %v72 = vld [vmem:[#allocation3 + $0xb8] sm:$0xff]
    %v73 = vld [vmem:[#allocation3 + $0xc0] sm:$0xff]
    %v74 = vld [vmem:[#allocation3 + $0xc8] sm:$0xff]
    %v75 = vld [vmem:[#allocation3 + $0xd0] sm:$0xff]
    %v76 = vld [vmem:[#allocation3 + $0xd8] sm:$0xff]
    %v77 = vld [vmem:[#allocation3 + $0xe0] sm:$0xff]
    %v78 = vld [vmem:[#allocation3 + $0xe8] sm:$0xff]
    %v79 = vld [vmem:[#allocation3 + $0xf0] sm:$0xff]
    %v80 = vld [vmem:[#allocation3 + $0xf8] sm:$0xff]
    %v81 = vld [vmem:[#allocation3 + $0x100] sm:$0xff]
    %v82 = vld [vmem:[#allocation3 + $0x108] sm:$0xff]
    %v83 = vld [vmem:[#allocation3 + $0x110] sm:$0xff]
    %v84 = vld [vmem:[#allocation3 + $0x118] sm:$0xff]
    %v85 = vld [vmem:[#allocation3 + $0x120] sm:$0xff]
    %v86 = vld [vmem:[#allocation3 + $0x128] sm:$0xff]
    %v87 = vld [vmem:[#allocation3 + $0x130] sm:$0xff]
    %v88 = vld [vmem:[#allocation3 + $0x138] sm:$0xff]
    %v89 = vld [vmem:[#allocation3 + $0x140] sm:$0xff]
    %v90 = vld [vmem:[#allocation3 + $0x148] sm:$0xff]
    %v91 = vld [vmem:[#allocation3 + $0x150] sm:$0xff]
    %v92 = vld [vmem:[#allocation3 + $0x158] sm:$0xff]
    %v93 = vld [vmem:[#allocation3 + $0x160] sm:$0xff]
    %v94 = vld [vmem:[#allocation3 + $0x168] sm:$0xff]
    %v95 = vld [vmem:[#allocation3 + $0x170] sm:$0xff]
    %v96 = vld [vmem:[#allocation3 + $0x178] sm:$0xff]
    %v97 = vld [vmem:[#allocation3 + $0x180] sm:$0xff]
    %v98 = vld [vmem:[#allocation3 + $0x188] sm:$0xff]
    %v99 = vld [vmem:[#allocation3 + $0x190] sm:$0xff]
    %v100 = vld [vmem:[#allocation3 + $0x198] sm:$0xff]
    %v101 = vld [vmem:[#allocation3 + $0x1a0] sm:$0xff]
    %v102 = vld [vmem:[#allocation3 + $0x1a8] sm:$0xff]
    %v103 = vld [vmem:[#allocation3 + $0x1b0] sm:$0xff]
    %v104 = vld [vmem:[#allocation3 + $0x1b8] sm:$0xff]
    %v105 = vld [vmem:[#allocation3 + $0x1c0] sm:$0xff]
    %v106 = vld [vmem:[#allocation3 + $0x1c8] sm:$0xff]
    %v107 = vld [vmem:[#allocation3 + $0x1d0] sm:$0xff]
    %v108 = vld [vmem:[#allocation3 + $0x1d8] sm:$0xff]
    %v109 = vld [vmem:[#allocation3 + $0x1e0] sm:$0xff]
    %v110 = vld [vmem:[#allocation3 + $0x1e8] sm:$0xff]
    %v111 = vld [vmem:[#allocation3 + $0x1f0] sm:$0xff]
    %v112 = vld [vmem:[#allocation3 + $0x1f8] sm:$0xff]
    %v113 = vld [vmem:[#allocation6] sm:$0xff]
    %v114 = vld [vmem:[#allocation6 + $0x8] sm:$0xff]
    %v115 = vld [vmem:[#allocation6 + $0x10] sm:$0xff]
    %v116 = vld [vmem:[#allocation6 + $0x18] sm:$0xff]
    %v117 = vld [vmem:[#allocation6 + $0x20] sm:$0xff]
    %v118 = vld [vmem:[#allocation6 + $0x28] sm:$0xff]
    %v119 = vld [vmem:[#allocation6 + $0x30] sm:$0xff]
    %v120 = vld [vmem:[#allocation6 + $0x38] sm:$0xff]
    %v121 = vld [vmem:[#allocation6 + $0x40] sm:$0xff]
    %v122 = vld [vmem:[#allocation6 + $0x48] sm:$0xff]
    %v123 = vld [vmem:[#allocation6 + $0x50] sm:$0xff]
    %v124 = vld [vmem:[#allocation6 + $0x58] sm:$0xff]
    %v125 = vld [vmem:[#allocation6 + $0x60] sm:$0xff]
    %v126 = vld [vmem:[#allocation6 + $0x68] sm:$0xff]
    %v127 = vld [vmem:[#allocation6 + $0x70] sm:$0xff]
    %v128 = vld [vmem:[#allocation6 + $0x78] sm:$0xff]
    %v129 = vld [vmem:[#allocation6 + $0x80] sm:$0xff]
    %v130 = vld [vmem:[#allocation6 + $0x88] sm:$0xff]
    %v131 = vld [vmem:[#allocation6 + $0x90] sm:$0xff]
    %v132 = vld [vmem:[#allocation6 + $0x98] sm:$0xff]
    %v133 = vld [vmem:[#allocation6 + $0xa0] sm:$0xff]
    %v134 = vld [vmem:[#allocation6 + $0xa8] sm:$0xff]
    %v135 = vld [vmem:[#allocation6 + $0xb0] sm:$0xff]
    %v136 = vld [vmem:[#allocation6 + $0xb8] sm:$0xff]
    %v137 = vld [vmem:[#allocation6 + $0xc0] sm:$0xff]
    %v138 = vld [vmem:[#allocation6 + $0xc8] sm:$0xff]
    %v139 = vld [vmem:[#allocation6 + $0xd0] sm:$0xff]
    %v140 = vld [vmem:[#allocation6 + $0xd8] sm:$0xff]
    %v141 = vld [vmem:[#allocation6 + $0xe0] sm:$0xff]
    %v142 = vld [vmem:[#allocation6 + $0xe8] sm:$0xff]
    %v143 = vld [vmem:[#allocation6 + $0xf0] sm:$0xff]
    %v144 = vld [vmem:[#allocation6 + $0xf8] sm:$0xff]
    %v145 = vld [vmem:[#allocation6 + $0x100] sm:$0xff]
    %v146 = vld [vmem:[#allocation6 + $0x108] sm:$0xff]
    %v147 = vld [vmem:[#allocation6 + $0x110] sm:$0xff]
    %v148 = vld [vmem:[#allocation6 + $0x118] sm:$0xff]
    %v149 = vld [vmem:[#allocation6 + $0x120] sm:$0xff]
    %v150 = vld [vmem:[#allocation6 + $0x128] sm:$0xff]
    %v151 = vld [vmem:[#allocation6 + $0x130] sm:$0xff]
    %v152 = vld [vmem:[#allocation6 + $0x138] sm:$0xff]
    %v153 = vld [vmem:[#allocation6 + $0x140] sm:$0xff]
    %v154 = vld [vmem:[#allocation6 + $0x148] sm:$0xff]
    %v155 = vld [vmem:[#allocation6 + $0x150] sm:$0xff]
    %v156 = vld [vmem:[#allocation6 + $0x158] sm:$0xff]
    %v157 = vld [vmem:[#allocation6 + $0x160] sm:$0xff]
    %v158 = vld [vmem:[#allocation6 + $0x168] sm:$0xff]
    %v159 = vld [vmem:[#allocation6 + $0x170] sm:$0xff]
    %v160 = vld [vmem:[#allocation6 + $0x178] sm:$0xff]
    %v161 = vld [vmem:[#allocation6 + $0x180] sm:$0xff]
    %v162 = vld [vmem:[#allocation6 + $0x188] sm:$0xff]
    %v163 = vld [vmem:[#allocation6 + $0x190] sm:$0xff]
    %v164 = vld [vmem:[#allocation6 + $0x198] sm:$0xff]
    %v165 = vld [vmem:[#allocation6 + $0x1a0] sm:$0xff]
    %v166 = vld [vmem:[#allocation6 + $0x1a8] sm:$0xff]
    %v167 = vld [vmem:[#allocation6 + $0x1b0] sm:$0xff]
    %v168 = vld [vmem:[#allocation6 + $0x1b8] sm:$0xff]
    %v169 = vld [vmem:[#allocation6 + $0x1c0] sm:$0xff]
    %v170 = vld [vmem:[#allocation6 + $0x1c8] sm:$0xff]
    %v171 = vld [vmem:[#allocation6 + $0x1d0] sm:$0xff]
    %v172 = vld [vmem:[#allocation6 + $0x1d8] sm:$0xff]
    %v173 = vld [vmem:[#allocation6 + $0x1e0] sm:$0xff]
    %v174 = vld [vmem:[#allocation6 + $0x1e8] sm:$0xff]
    %v175 = vld [vmem:[#allocation6 + $0x1f0] sm:$0xff]
    %v176 = vld [vmem:[#allocation6 + $0x1f8] sm:$0xff]
    %s177 = ssub.f32 1.0, %s48
    %v178 = vstv %s177
    %v179 = vmul.f32 %v178, %v49
    %v180 = vmul.f32 %v178, %v50
    %v181 = vmul.f32 %v178, %v51
    %v182 = vmul.f32 %v178, %v52
    %v183 = vmul.f32 %v178, %v53
    %v184 = vmul.f32 %v178, %v54
    %v185 = vmul.f32 %v178, %v55
    %v186 = vmul.f32 %v178, %v56
    %v187 = vmul.f32 %v178, %v57
    %v188 = vmul.f32 %v178, %v58
    %v189 = vmul.f32 %v178, %v59
    %v190 = vmul.f32 %v178, %v60
    %v191 = vmul.f32 %v178, %v61
    %v192 = vmul.f32 %v178, %v62
    %v193 = vmul.f32 %v178, %v63
    %v194 = vmul.f32 %v178, %v64
    %v195 = vmul.f32 %v178, %v65
    %v196 = vmul.f32 %v178, %v66
    %v197 = vmul.f32 %v178, %v67
    %v198 = vmul.f32 %v178, %v68
    %v199 = vmul.f32 %v178, %v69
    %v200 = vmul.f32 %v178, %v70
    %v201 = vmul.f32 %v178, %v71
    %v202 = vmul.f32 %v178, %v72
    %v203 = vmul.f32 %v178, %v73
    %v204 = vmul.f32 %v178, %v74
    %v205 = vmul.f32 %v178, %v75
    %v206 = vmul.f32 %v178, %v76
    %v207 = vmul.f32 %v178, %v77
    %v208 = vmul.f32 %v178, %v78
    %v209 = vmul.f32 %v178, %v79
    %v210 = vmul.f32 %v178, %v80
    %v211 = vmul.f32 %v178, %v81
    %v212 = vmul.f32 %v178, %v82
    %v213 = vmul.f32 %v178, %v83
    %v214 = vmul.f32 %v178, %v84
    %v215 = vmul.f32 %v178, %v85
    %v216 = vmul.f32 %v178, %v86
    %v217 = vmul.f32 %v178, %v87
    %v218 = vmul.f32 %v178, %v88
    %v219 = vmul.f32 %v178, %v89
    %v220 = vmul.f32 %v178, %v90
    %v221 = vmul.f32 %v178, %v91
    %v222 = vmul.f32 %v178, %v92
    %v223 = vmul.f32 %v178, %v93
    %v224 = vmul.f32 %v178, %v94
    %v225 = vmul.f32 %v178, %v95
    %v226 = vmul.f32 %v178, %v96
    %v227 = vmul.f32 %v178, %v97
    %v228 = vmul.f32 %v178, %v98
    %v229 = vmul.f32 %v178, %v99
    %v230 = vmul.f32 %v178, %v100
    %v231 = vmul.f32 %v178, %v101
    %v232 = vmul.f32 %v178, %v102
    %v233 = vmul.f32 %v178, %v103
    %v234 = vmul.f32 %v178, %v104
    %v235 = vmul.f32 %v178, %v105
    %v236 = vmul.f32 %v178, %v106
    %v237 = vmul.f32 %v178, %v107
    %v238 = vmul.f32 %v178, %v108
    %v239 = vmul.f32 %v178, %v109
    %v240 = vmul.f32 %v178, %v110
    %v241 = vmul.f32 %v178, %v111
    %v242 = vmul.f32 %v178, %v112
    %v243 = vstv %s48
    %v244 = vmul.f32 %v243, %v113
    %v245 = vmul.f32 %v243, %v114
    %v246 = vmul.f32 %v243, %v115
    %v247 = vmul.f32 %v243, %v116
    %v248 = vmul.f32 %v243, %v117
    %v249 = vmul.f32 %v243, %v118
    %v250 = vmul.f32 %v243, %v119
    %v251 = vmul.f32 %v243, %v120
    %v252 = vmul.f32 %v243, %v121
    %v253 = vmul.f32 %v243, %v122
    %v254 = vmul.f32 %v243, %v123
    %v255 = vmul.f32 %v243, %v124
    %v256 = vmul.f32 %v243, %v125
    %v257 = vmul.f32 %v243, %v126
    %v258 = vmul.f32 %v243, %v127
    %v259 = vmul.f32 %v243, %v128
    %v260 = vmul.f32 %v243, %v129
    %v261 = vmul.f32 %v243, %v130
    %v262 = vmul.f32 %v243, %v131
    %v263 = vmul.f32 %v243, %v132
    %v264 = vmul.f32 %v243, %v133
    %v265 = vmul.f32 %v243, %v134
    %v266 = vmul.f32 %v243, %v135
    %v267 = vmul.f32 %v243, %v136
    %v268 = vmul.f32 %v243, %v137
    %v269 = vmul.f32 %v243, %v138
    %v270 = vmul.f32 %v243, %v139
    %v271 = vmul.f32 %v243, %v140
    %v272 = vmul.f32 %v243, %v141
    %v273 = vmul.f32 %v243, %v142
    %v274 = vmul.f32 %v243, %v143
    %v275 = vmul.f32 %v243, %v144
    %v276 = vmul.f32 %v243, %v145
    %v277 = vmul.f32 %v243, %v146
    %v278 = vmul.f32 %v243, %v147
    %v279 = vmul.f32 %v243, %v148
    %v280 = vmul.f32 %v243, %v149
    %v281 = vmul.f32 %v243, %v150
    %v282 = vmul.f32 %v243, %v151
    %v283 = vmul.f32 %v243, %v152
    %v284 = vmul.f32 %v243, %v153
    %v285 = vmul.f32 %v243, %v154
    %v286 = vmul.f32 %v243, %v155
    %v287 = vmul.f32 %v243, %v156
    %v288 = vmul.f32 %v243, %v157
    %v289 = vmul.f32 %v243, %v158
    %v290 = vmul.f32 %v243, %v159
    %v291 = vmul.f32 %v243, %v160
    %v292 = vmul.f32 %v243, %v161
    %v293 = vmul.f32 %v243, %v162
    %v294 = vmul.f32 %v243, %v163
    %v295 = vmul.f32 %v243, %v164
    %v296 = vmul.f32 %v243, %v165
    %v297 = vmul.f32 %v243, %v166
    %v298 = vmul.f32 %v243, %v167
    %v299 = vmul.f32 %v243, %v168
    %v300 = vmul.f32 %v243, %v169
    %v301 = vmul.f32 %v243, %v170
    %v302 = vmul.f32 %v243, %v171
    %v303 = vmul.f32 %v243, %v172
    %v304 = vmul.f32 %v243, %v173
    %v305 = vmul.f32 %v243, %v174
    %v306 = vmul.f32 %v243, %v175
    %v307 = vmul.f32 %v243, %v176
    %v308 = vadd.f32 %v179, %v244
    %v309 = vadd.f32 %v180, %v245
    %v310 = vadd.f32 %v181, %v246
    %v311 = vadd.f32 %v182, %v247
    %v312 = vadd.f32 %v183, %v248
    %v313 = vadd.f32 %v184, %v249
    %v314 = vadd.f32 %v185, %v250
    %v315 = vadd.f32 %v186, %v251
    %v316 = vadd.f32 %v187, %v252
    %v317 = vadd.f32 %v188, %v253
    %v318 = vadd.f32 %v189, %v254
    %v319 = vadd.f32 %v190, %v255
    %v320 = vadd.f32 %v191, %v256
    %v321 = vadd.f32 %v192, %v257
    %v322 = vadd.f32 %v193, %v258
    %v323 = vadd.f32 %v194, %v259
    %v324 = vadd.f32 %v195, %v260
    %v325 = vadd.f32 %v196, %v261
    %v326 = vadd.f32 %v197, %v262
    %v327 = vadd.f32 %v198, %v263
    %v328 = vadd.f32 %v199, %v264
    %v329 = vadd.f32 %v200, %v265
    %v330 = vadd.f32 %v201, %v266
    %v331 = vadd.f32 %v202, %v267
    %v332 = vadd.f32 %v203, %v268
    %v333 = vadd.f32 %v204, %v269
    %v334 = vadd.f32 %v205, %v270
    %v335 = vadd.f32 %v206, %v271
    %v336 = vadd.f32 %v207, %v272
    %v337 = vadd.f32 %v208, %v273
    %v338 = vadd.f32 %v209, %v274
    %v339 = vadd.f32 %v210, %v275
    %v340 = vadd.f32 %v211, %v276
    %v341 = vadd.f32 %v212, %v277
    %v342 = vadd.f32 %v213, %v278
    %v343 = vadd.f32 %v214, %v279
    %v344 = vadd.f32 %v215, %v280
    %v345 = vadd.f32 %v216, %v281
    %v346 = vadd.f32 %v217, %v282
    %v347 = vadd.f32 %v218, %v283
    %v348 = vadd.f32 %v219, %v284
    %v349 = vadd.f32 %v220, %v285
    %v350 = vadd.f32 %v221, %v286
    %v351 = vadd.f32 %v222, %v287
    %v352 = vadd.f32 %v223, %v288
    %v353 = vadd.f32 %v224, %v289
    %v354 = vadd.f32 %v225, %v290
    %v355 = vadd.f32 %v226, %v291
    %v356 = vadd.f32 %v227, %v292
    %v357 = vadd.f32 %v228, %v293
    %v358 = vadd.f32 %v229, %v294
    %v359 = vadd.f32 %v230, %v295
    %v360 = vadd.f32 %v231, %v296
    %v361 = vadd.f32 %v232, %v297
    %v362 = vadd.f32 %v233, %v298
    %v363 = vadd.f32 %v234, %v299
    %v364 = vadd.f32 %v235, %v300
    %v365 = vadd.f32 %v236, %v301
    %v366 = vadd.f32 %v237, %v302
    %v367 = vadd.f32 %v238, %v303
    %v368 = vadd.f32 %v239, %v304
    %v369 = vadd.f32 %v240, %v305
    %v370 = vadd.f32 %v241, %v306
    %v371 = vadd.f32 %v242, %v307
    %372 = vst [vmem:[#allocation8] sm:$0xff] %v308
    %373 = vst [vmem:[#allocation8 + $0x8] sm:$0xff] %v309
    %374 = vst [vmem:[#allocation8 + $0x10] sm:$0xff] %v310
    %375 = vst [vmem:[#allocation8 + $0x18] sm:$0xff] %v311
    %376 = vst [vmem:[#allocation8 + $0x20] sm:$0xff] %v312
    %377 = vst [vmem:[#allocation8 + $0x28] sm:$0xff] %v313
    %378 = vst [vmem:[#allocation8 + $0x30] sm:$0xff] %v314
    %379 = vst [vmem:[#allocation8 + $0x38] sm:$0xff] %v315
    %380 = vst [vmem:[#allocation8 + $0x40] sm:$0xff] %v316
    %381 = vst [vmem:[#allocation8 + $0x48] sm:$0xff] %v317
    %382 = vst [vmem:[#allocation8 + $0x50] sm:$0xff] %v318
    %383 = vst [vmem:[#allocation8 + $0x58] sm:$0xff] %v319
    %384 = vst [vmem:[#allocation8 + $0x60] sm:$0xff] %v320
    %385 = vst [vmem:[#allocation8 + $0x68] sm:$0xff] %v321
    %386 = vst [vmem:[#allocation8 + $0x70] sm:$0xff] %v322
    %387 = vst [vmem:[#allocation8 + $0x78] sm:$0xff] %v323
    %388 = vst [vmem:[#allocation8 + $0x80] sm:$0xff] %v324
    %389 = vst [vmem:[#allocation8 + $0x88] sm:$0xff] %v325
    %390 = vst [vmem:[#allocation8 + $0x90] sm:$0xff] %v326
    %391 = vst [vmem:[#allocation8 + $0x98] sm:$0xff] %v327
    %392 = vst [vmem:[#allocation8 + $0xa0] sm:$0xff] %v328
    %393 = vst [vmem:[#allocation8 + $0xa8] sm:$0xff] %v329
    %394 = vst [vmem:[#allocation8 + $0xb0] sm:$0xff] %v330
    %395 = vst [vmem:[#allocation8 + $0xb8] sm:$0xff] %v331
    %396 = vst [vmem:[#allocation8 + $0xc0] sm:$0xff] %v332
    %397 = vst [vmem:[#allocation8 + $0xc8] sm:$0xff] %v333
    %398 = vst [vmem:[#allocation8 + $0xd0] sm:$0xff] %v334
    %399 = vst [vmem:[#allocation8 + $0xd8] sm:$0xff] %v335
    %400 = vst [vmem:[#allocation8 + $0xe0] sm:$0xff] %v336
    %401 = vst [vmem:[#allocation8 + $0xe8] sm:$0xff] %v337
    %402 = vst [vmem:[#allocation8 + $0xf0] sm:$0xff] %v338
    %403 = vst [vmem:[#allocation8 + $0xf8] sm:$0xff] %v339
    %404 = vst [vmem:[#allocation8 + $0x100] sm:$0xff] %v340
    %405 = vst [vmem:[#allocation8 + $0x108] sm:$0xff] %v341
    %406 = vst [vmem:[#allocation8 + $0x110] sm:$0xff] %v342
    %407 = vst [vmem:[#allocation8 + $0x118] sm:$0xff] %v343
    %408 = vst [vmem:[#allocation8 + $0x120] sm:$0xff] %v344
    %409 = vst [vmem:[#allocation8 + $0x128] sm:$0xff] %v345
    %410 = vst [vmem:[#allocation8 + $0x130] sm:$0xff] %v346
    %411 = vst [vmem:[#allocation8 + $0x138] sm:$0xff] %v347
    %412 = vst [vmem:[#allocation8 + $0x140] sm:$0xff] %v348
    %413 = vst [vmem:[#allocation8 + $0x148] sm:$0xff] %v349
    %414 = vst [vmem:[#allocation8 + $0x150] sm:$0xff] %v350
    %415 = vst [vmem:[#allocation8 + $0x158] sm:$0xff] %v351
    %416 = vst [vmem:[#allocation8 + $0x160] sm:$0xff] %v352
    %417 = vst [vmem:[#allocation8 + $0x168] sm:$0xff] %v353
    %418 = vst [vmem:[#allocation8 + $0x170] sm:$0xff] %v354
    %419 = vst [vmem:[#allocation8 + $0x178] sm:$0xff] %v355
    %420 = vst [vmem:[#allocation8 + $0x180] sm:$0xff] %v356
    %421 = vst [vmem:[#allocation8 + $0x188] sm:$0xff] %v357
    %422 = vst [vmem:[#allocation8 + $0x190] sm:$0xff] %v358
    %423 = vst [vmem:[#allocation8 + $0x198] sm:$0xff] %v359
    %424 = vst [vmem:[#allocation8 + $0x1a0] sm:$0xff] %v360
    %425 = vst [vmem:[#allocation8 + $0x1a8] sm:$0xff] %v361
    %426 = vst [vmem:[#allocation8 + $0x1b0] sm:$0xff] %v362
    %427 = vst [vmem:[#allocation8 + $0x1b8] sm:$0xff] %v363
    %428 = vst [vmem:[#allocation8 + $0x1c0] sm:$0xff] %v364
    %429 = vst [vmem:[#allocation8 + $0x1c8] sm:$0xff] %v365
    %430 = vst [vmem:[#allocation8 + $0x1d0] sm:$0xff] %v366
    %431 = vst [vmem:[#allocation8 + $0x1d8] sm:$0xff] %v367
    %432 = vst [vmem:[#allocation8 + $0x1e0] sm:$0xff] %v368
    %433 = vst [vmem:[#allocation8 + $0x1e8] sm:$0xff] %v369
    %434 = vst [vmem:[#allocation8 + $0x1f0] sm:$0xff] %v370
    %435 = vst [vmem:[#allocation8 + $0x1f8] sm:$0xff] %v371
    // Predicated region
    $region22: #{tpu_custom_call.1} parent=1 // pred_check
      _
    $region23: #{tpu_custom_call.1} parent=1 // pred_check_branch
      %437 = sbr.rel (0) target = $region25
    $region24: #{tpu_custom_call.1} parent=1 // pred_region
      %439 = vsyncadd [#allocation5], 0
      %s440 = sshll.u32 [#allocation8], 4
      %s441 = int_to_ptr.vmem [resolvable:$true] %s440
      %s442 = sshll.u32 %s3, 4
      %s443 = int_to_ptr.hbm [resolvable:$true] %s442
      %448 = dma.vmem_to_hbm [thread:$0]  %s441, 8192, %s443, [#allocation5], 512, 512, 32
    $region25: #{tpu_custom_call.1} parent=1 // pred_fallthru
      _
    // Predicated region
    $region26: #{tpu_custom_call.1} parent=1 // pred_check
      _
    $region27: #{tpu_custom_call.1} parent=1 // pred_check_branch
      %450 = sbr.rel (0) target = $region29
    $region28: #{tpu_custom_call.1} parent=1 // pred_region
      %452 = dma.done [#allocation5], 8192
    $region29: #{tpu_custom_call.1} parent=1 // pred_fallthru
      _
    %453 = vsyncpa [#allocation4], 1
    %454 = vsyncpa [#allocation7], 1
    %455 = vsyncpa [#allocation5], 1

</llo_original>
